<compile_context>
chip_gen: v7x
topology: tpu7x:2x2x1
jax: 0.10.0
libtpu: 0.0.40
codegen_flags: <defaults>
</compile_context>

<pallas_src>
import jax
import jax.numpy as jnp
from jax.experimental import pallas as pl
from jax.experimental.pallas import tpu as pltpu


def _make_fused_kernel(num_layers, B, N, E, units):
    """Build the fused multi-layer GraphConv kernel (all sizes static)."""
    Em1 = E - 1

    def kernel(adj_ref, feat_ref, *rest):
        out_ref = rest[-1]
        wb_refs = rest[:-1]  # (w_cat_0, b_cat_0, w_cat_1, b_cat_1, ...)

        adj = adj_ref[...]    # (B, N, Em1*N)  rows = [A_0[b] | A_1[b] | ...]
        feat = feat_ref[...]  # (B*N, F)

        hidden = None
        for l in range(num_layers):
            w_cat = wb_refs[2 * l][...]       # (Fin_l, E*U_l)  cols = [W2 | W1_0 | ... | W1_{E-2}]
            b_cat = wb_refs[2 * l + 1][...]   # (1,     E*U_l)
            U = units[l]

            # annotations = cat((hidden, features), -1) -- done in-kernel, 2D.
            ann = feat if hidden is None else jnp.concatenate([hidden, feat], axis=-1)

            # ONE fused projection: skip linear + all per-edge linears (+ biases).
            proj = jnp.dot(ann, w_cat, preferred_element_type=jnp.float32) + b_cat  # (B*N, E*U)

            skip = proj[:, :U]  # (B*N, U) == ann @ W2 + b2

            # Stack per-edge projections vertically -> (B, Em1*N, U) so that
            # sum_e A_e @ (ann @ W1_e + b1_e) is ONE batched matmul with K = Em1*N.
            h_stack = jnp.concatenate(
                [proj[:, (e + 1) * U:(e + 2) * U].reshape(B, N, U) for e in range(Em1)],
                axis=1,
            )  # (B, Em1*N, U)

            agg = jnp.einsum("bnk,bku->bnu", adj, h_stack,
                             preferred_element_type=jnp.float32)  # (B, N, U)

            hidden = jnp.tanh(agg.reshape(B * N, U) + skip)  # dropout == identity (eval)

        out_ref[...] = hidden.astype(out_ref.dtype)

    return kernel


def _full_block(shape):
    ndim = len(shape)
    return pl.BlockSpec(shape, lambda i, _n=ndim: (0,) * _n)


def multi_graph_conv(params_list, adjacency, features):
    """Fused MultiGraphConv forward. adjacency: (B,E,N,N), features: (B,N,F)."""
    B, E, N, _ = adjacency.shape
    F = features.shape[-1]
    Em1 = E - 1
    num_layers = len(params_list)
    units = tuple(int(p["w2"].shape[1]) for p in params_list)

    # Hoisted once (not per layer): drop last edge type, lay adjacency slices
    # side-by-side along lanes: adj_cat[b] = [A_0[b] | A_1[b] | ...] : (N, Em1*N).
    adj_cat = jnp.transpose(adjacency[:, :Em1], (0, 2, 1, 3)).reshape(B, N, Em1 * N)

    # Flatten batch into rows so the projection matmul has M = B*N.
    feat_flat = features.reshape(B * N, F)

    # Fuse skip + per-edge weights/biases into single slabs (column block 0 = skip).
    fused_inputs = []
    for p in params_list:
        ne = p["w1"].shape[0]
        w_cat = jnp.concatenate([p["w2"]] + [p["w1"][e] for e in range(ne)], axis=1)  # (Fin, E*U)
        b_cat = jnp.concatenate([p["b2"]] + [p["b1"][e] for e in range(ne)], axis=1)  # (1,   E*U)
        fused_inputs += [w_cat, b_cat]

    kernel = _make_fused_kernel(num_layers, B, N, E, units)

    in_arrays = [adj_cat, feat_flat] + fused_inputs
    in_specs = [_full_block(a.shape) for a in in_arrays]
    out_shape = jax.ShapeDtypeStruct((B * N, units[-1]), jnp.float32)

    out_flat = pl.pallas_call(
        kernel,
        out_shape=out_shape,
        grid=(1,),
        in_specs=in_specs,
        out_specs=_full_block((B * N, units[-1])),
        compiler_params=pltpu.CompilerParams(dimension_semantics=("arbitrary",)),
    )(*in_arrays)

    return out_flat.reshape(B, N, units[-1])


def init_graph_conv_params(key, units, features_dim, edges):
    k1, k2, k3, k4 = jax.random.split(key, 4)
    scale = 1.0 / jnp.sqrt(jnp.float32(features_dim))
    return dict(
        w1=jax.random.uniform(k1, (edges - 1, features_dim, units), jnp.float32, -scale, scale),
        b1=jax.random.uniform(k2, (edges - 1, 1, units), jnp.float32, -scale, scale),
        w2=jax.random.uniform(k3, (features_dim, units), jnp.float32, -scale, scale),
        b2=jax.random.uniform(k4, (1, units), jnp.float32, -scale, scale),
    )


def init_multi_graph_conv_params(key, units, features_dim, edges):
    params = []
    keys = jax.random.split(key, len(units))
    params.append(init_graph_conv_params(keys[0], units[0], features_dim, edges))
    for idx, unit in enumerate(units[1:]):
        params.append(init_graph_conv_params(keys[idx + 1], unit, features_dim + units[idx], edges))
    return params


def multi_graph_conv_ref(params_list, adjacency, features):
    """Pure-JAX reference mirroring the PyTorch forward (dropout = identity)."""
    hidden = None
    for p in params_list:
        ann = features if hidden is None else jnp.concatenate([hidden, features], axis=-1)
        res = jnp.einsum("bnf,efu->benu", ann, p["w1"]) + p["b1"][None, :, :, :]
        matrix = jnp.einsum("benm,bemu->benu", adjacency[:, :-1], res)
        total = jnp.sum(matrix, axis=1) + (jnp.einsum("bnf,fu->bnu", ann, p["w2"]) + p["b2"][None])
        hidden = jnp.tanh(total)
    return hidden


if __name__ == "__main__":
    # Small, deterministic example shapes.
    B, N, F, E = 2, 16, 8, 4
    units = [32, 16]
    dropout_rate = 0.0  # identity

    key = jax.random.PRNGKey(0)
    k_adj, k_feat, k_params = jax.random.split(key, 3)
    adjacency = jax.random.uniform(k_adj, (B, E, N, N), jnp.float32)
    features = jax.random.normal(k_feat, (B, N, F), jnp.float32)
    params = init_multi_graph_conv_params(k_params, units, F, E)

    out = multi_graph_conv(params, adjacency, features)
    out = jax.block_until_ready(out)

    ref = multi_graph_conv_ref(params, adjacency, features)
    assert out.shape == (B, N, units[-1])
    assert jnp.allclose(out, ref, atol=1e-4, rtol=1e-4), "Pallas result mismatch vs JAX reference"

    print("KERNEL_OK")
</pallas_src>

<mosaic_0001>
module attributes {stable_mosaic.version = 11 : i64} {
  func.func @kernel(%arg0: i32, %arg1: memref<2x16x48xf32, #tpu.memory_space<vmem>>, %arg2: memref<32x8xf32, #tpu.memory_space<vmem>>, %arg3: memref<8x128xf32, #tpu.memory_space<vmem>>, %arg4: memref<1x128xf32, #tpu.memory_space<vmem>>, %arg5: memref<40x64xf32, #tpu.memory_space<vmem>>, %arg6: memref<1x64xf32, #tpu.memory_space<vmem>>, %arg7: memref<32x16xf32, #tpu.memory_space<vmem>>) attributes {dimension_semantics = [#tpu.dimension_semantics<arbitrary>], iteration_bounds = array<i64: 1>, scalar_prefetch = 0 : i64, scratch_operands = 0 : i64, tpu.core_type = #tpu.core_type<tc>, window_params = [{pipeline_mode = #tpu.pipeline_mode<synchronous>, transform_indices = @transform_0, window_bounds = array<i64: 2, 16, 48>}, {pipeline_mode = #tpu.pipeline_mode<synchronous>, transform_indices = @transform_1, window_bounds = array<i64: 32, 8>}, {pipeline_mode = #tpu.pipeline_mode<synchronous>, transform_indices = @transform_2, window_bounds = array<i64: 8, 128>}, {pipeline_mode = #tpu.pipeline_mode<synchronous>, transform_indices = @transform_3, window_bounds = array<i64: 1, 128>}, {pipeline_mode = #tpu.pipeline_mode<synchronous>, transform_indices = @transform_4, window_bounds = array<i64: 40, 64>}, {pipeline_mode = #tpu.pipeline_mode<synchronous>, transform_indices = @transform_5, window_bounds = array<i64: 1, 64>}, {pipeline_mode = #tpu.pipeline_mode<synchronous>, transform_indices = @transform_6, window_bounds = array<i64: 32, 16>}]} {
    %c0 = arith.constant 0 : index
    %c0_0 = arith.constant 0 : index
    %c0_1 = arith.constant 0 : index
    %0 = vector.load %arg1[%c0, %c0_0, %c0_1] : memref<2x16x48xf32, #tpu.memory_space<vmem>>, vector<2x16x48xf32>
    %c0_2 = arith.constant 0 : index
    %c0_3 = arith.constant 0 : index
    %1 = vector.load %arg2[%c0_2, %c0_3] : memref<32x8xf32, #tpu.memory_space<vmem>>, vector<32x8xf32>
    %c0_4 = arith.constant 0 : index
    %c0_5 = arith.constant 0 : index
    %2 = vector.load %arg3[%c0_4, %c0_5] : memref<8x128xf32, #tpu.memory_space<vmem>>, vector<8x128xf32>
    %c0_6 = arith.constant 0 : index
    %c0_7 = arith.constant 0 : index
    %3 = vector.load %arg4[%c0_6, %c0_7] : memref<1x128xf32, #tpu.memory_space<vmem>>, vector<1x128xf32>
    %cst = arith.constant dense<0.000000e+00> : vector<32x128xf32>
    %4 = tpu.matmul %1, %2, %cst {dimension_numbers = #tpu.dot_dimension_numbers<[1], [0], [0], [1], [0, 0, 1, 1], [], []>} : vector<32x8xf32>, vector<8x128xf32>, vector<32x128xf32> -> vector<32x128xf32>
    %5 = vector.broadcast %3 : vector<1x128xf32> to vector<32x128xf32>
    %6 = arith.addf %4, %5 : vector<32x128xf32>
    %7 = vector.extract_strided_slice %6 {offsets = [0, 0], sizes = [32, 32], strides = [1, 1]} : vector<32x128xf32> to vector<32x32xf32>
    %8 = vector.extract_strided_slice %6 {offsets = [0, 32], sizes = [32, 32], strides = [1, 1]} : vector<32x128xf32> to vector<32x32xf32>
    %9 = vector.shape_cast %8 : vector<32x32xf32> to vector<2x16x32xf32>
    %10 = vector.extract_strided_slice %6 {offsets = [0, 64], sizes = [32, 32], strides = [1, 1]} : vector<32x128xf32> to vector<32x32xf32>
    %11 = vector.shape_cast %10 : vector<32x32xf32> to vector<2x16x32xf32>
    %12 = vector.extract_strided_slice %6 {offsets = [0, 96], sizes = [32, 32], strides = [1, 1]} : vector<32x128xf32> to vector<32x32xf32>
    %13 = vector.shape_cast %12 : vector<32x32xf32> to vector<2x16x32xf32>
    %14 = tpu.concatenate %9, %11, %13 in 1 : vector<2x16x32xf32>, vector<2x16x32xf32>, vector<2x16x32xf32> -> vector<2x48x32xf32>
    "tpu.trace_start"() <{level = 10 : i32, message = "bnk,bku->bnu"}> : () -> ()
    %cst_8 = arith.constant dense<0.000000e+00> : vector<2x16x32xf32>
    %15 = tpu.matmul %0, %14, %cst_8 {dimension_numbers = #tpu.dot_dimension_numbers<[2], [1], [1], [2], [0, 0, 0, 1, 1, 2], [0], [0]>} : vector<2x16x48xf32>, vector<2x48x32xf32>, vector<2x16x32xf32> -> vector<2x16x32xf32>
    "tpu.trace_stop"() : () -> ()
    %16 = vector.shape_cast %15 : vector<2x16x32xf32> to vector<32x32xf32>
    %17 = arith.addf %16, %7 : vector<32x32xf32>
    %18 = math.tanh %17 : vector<32x32xf32>
    %c0_9 = arith.constant 0 : index
    %c0_10 = arith.constant 0 : index
    %19 = vector.load %arg5[%c0_9, %c0_10] : memref<40x64xf32, #tpu.memory_space<vmem>>, vector<40x64xf32>
    %c0_11 = arith.constant 0 : index
    %c0_12 = arith.constant 0 : index
    %20 = vector.load %arg6[%c0_11, %c0_12] : memref<1x64xf32, #tpu.memory_space<vmem>>, vector<1x64xf32>
    %21 = tpu.concatenate %18, %1 in 1 : vector<32x32xf32>, vector<32x8xf32> -> vector<32x40xf32>
    %cst_13 = arith.constant dense<0.000000e+00> : vector<32x64xf32>
    %22 = tpu.matmul %21, %19, %cst_13 {dimension_numbers = #tpu.dot_dimension_numbers<[1], [0], [0], [1], [0, 0, 1, 1], [], []>} : vector<32x40xf32>, vector<40x64xf32>, vector<32x64xf32> -> vector<32x64xf32>
    %23 = vector.broadcast %20 : vector<1x64xf32> to vector<32x64xf32>
    %24 = arith.addf %22, %23 : vector<32x64xf32>
    %25 = vector.extract_strided_slice %24 {offsets = [0, 0], sizes = [32, 16], strides = [1, 1]} : vector<32x64xf32> to vector<32x16xf32>
    %26 = vector.extract_strided_slice %24 {offsets = [0, 16], sizes = [32, 16], strides = [1, 1]} : vector<32x64xf32> to vector<32x16xf32>
    %27 = vector.shape_cast %26 : vector<32x16xf32> to vector<2x16x16xf32>
    %28 = vector.extract_strided_slice %24 {offsets = [0, 32], sizes = [32, 16], strides = [1, 1]} : vector<32x64xf32> to vector<32x16xf32>
    %29 = vector.shape_cast %28 : vector<32x16xf32> to vector<2x16x16xf32>
    %30 = vector.extract_strided_slice %24 {offsets = [0, 48], sizes = [32, 16], strides = [1, 1]} : vector<32x64xf32> to vector<32x16xf32>
    %31 = vector.shape_cast %30 : vector<32x16xf32> to vector<2x16x16xf32>
    %32 = tpu.concatenate %27, %29, %31 in 1 : vector<2x16x16xf32>, vector<2x16x16xf32>, vector<2x16x16xf32> -> vector<2x48x16xf32>
    "tpu.trace_start"() <{level = 10 : i32, message = "bnk,bku->bnu"}> : () -> ()
    %cst_14 = arith.constant dense<0.000000e+00> : vector<2x16x16xf32>
    %33 = tpu.matmul %0, %32, %cst_14 {dimension_numbers = #tpu.dot_dimension_numbers<[2], [1], [1], [2], [0, 0, 0, 1, 1, 2], [0], [0]>} : vector<2x16x48xf32>, vector<2x48x16xf32>, vector<2x16x16xf32> -> vector<2x16x16xf32>
    "tpu.trace_stop"() : () -> ()
    %34 = vector.shape_cast %33 : vector<2x16x16xf32> to vector<32x16xf32>
    %35 = arith.addf %34, %25 : vector<32x16xf32>
    %36 = math.tanh %35 : vector<32x16xf32>
    %c0_15 = arith.constant 0 : index
    %c0_16 = arith.constant 0 : index
    %37 = vector.load %arg7[%c0_15, %c0_16] : memref<32x16xf32, #tpu.memory_space<vmem>>, vector<32x16xf32>
    tpu.vector_store %arg7[%c0_15, %c0_16], %36 {strides = array<i32>} : memref<32x16xf32, #tpu.memory_space<vmem>>, vector<32x16xf32>,
    return
  }
  func.func @transform_0(%arg0: i32) -> (i32, i32, i32) {
    %c0_i32 = arith.constant 0 : i32
    %c0_i32_0 = arith.constant 0 : i32
    %c0_i32_1 = arith.constant 0 : i32
    %c0_i32_2 = arith.constant 0 : i32
    return %c0_i32, %c0_i32_0, %c0_i32_1 : i32, i32, i32
  }
  func.func @transform_1(%arg0: i32) -> (i32, i32) {
    %c0_i32 = arith.constant 0 : i32
    %c0_i32_0 = arith.constant 0 : i32
    %c0_i32_1 = arith.constant 0 : i32
    return %c0_i32, %c0_i32_0 : i32, i32
  }
  func.func @transform_2(%arg0: i32) -> (i32, i32) {
    %c0_i32 = arith.constant 0 : i32
    %c0_i32_0 = arith.constant 0 : i32
    %c0_i32_1 = arith.constant 0 : i32
    return %c0_i32, %c0_i32_0 : i32, i32
  }
  func.func @transform_3(%arg0: i32) -> (i32, i32) {
    %c0_i32 = arith.constant 0 : i32
    %c0_i32_0 = arith.constant 0 : i32
    %c0_i32_1 = arith.constant 0 : i32
    return %c0_i32, %c0_i32_0 : i32, i32
  }
  func.func @transform_4(%arg0: i32) -> (i32, i32) {
    %c0_i32 = arith.constant 0 : i32
    %c0_i32_0 = arith.constant 0 : i32
    %c0_i32_1 = arith.constant 0 : i32
    return %c0_i32, %c0_i32_0 : i32, i32
  }
  func.func @transform_5(%arg0: i32) -> (i32, i32) {
    %c0_i32 = arith.constant 0 : i32
    %c0_i32_0 = arith.constant 0 : i32
    %c0_i32_1 = arith.constant 0 : i32
    return %c0_i32, %c0_i32_0 : i32, i32
  }
  func.func @transform_6(%arg0: i32) -> (i32, i32) {
    %c0_i32 = arith.constant 0 : i32
    %c0_i32_0 = arith.constant 0 : i32
    %c0_i32_1 = arith.constant 0 : i32
    return %c0_i32, %c0_i32_0 : i32, i32
  }
}

</mosaic_0001>

<llo_original>
// kernel: tpu_custom_call.1
$region0: #{tpu_custom_call.1}
  #allocation0 [shape = 'u32[]', space=smem, size = 0x4, offset = 0x4, fixed_abs, tag = 'smem constant byte address 0x4 - core index']
  #allocation1 [shape = 'u32[144,128]{1,0:T(1,128)}', space=vmem, size = 0x12000, scoped, tag = 'internal scratch']
  %s0 = inlined_call_operand.hbm [shape: f32[2,16,48], index: 0, kind: input, shape index: {}]
  %s1 = inlined_call_operand.vmem [shape: f32[32,8], index: 1, kind: input, shape index: {}]
  %s2 = inlined_call_operand.vmem [shape: f32[8,128], index: 2, kind: input, shape index: {}]
  %s3 = inlined_call_operand.vmem [shape: f32[1,128], index: 3, kind: input, shape index: {}]
  %s4 = inlined_call_operand.vmem [shape: f32[40,64], index: 4, kind: input, shape index: {}]
  %s5 = inlined_call_operand.vmem [shape: f32[1,64], index: 5, kind: input, shape index: {}]
  %s6 = inlined_call_operand.vmem [shape: f32[32,16], index: 6, kind: output, shape index: {}]
  %s7 = sld [smem:[#allocation0]]
  $region38: #{tpu_custom_call.1} parent=0
    _
  %s9 = ssub.s32 1, %s7
  %s10 = scalar_select 0, %s9, %s7
  $region1: #{tpu_custom_call.1} parent=0
    #allocation2 [shape = 'u8[16384]{0}', space=vmem, size = 0x4000, scoped, tag = 'input window, operand 0, single buffered']
    #allocation3 [shape = 's32[1]{0}', space=sflag, size = 0x4, scoped, tag = 'scoped memory for tpu_custom_call.1']
    %11 = vsyncpa [#allocation3], 0
    // Predicated region
    $region2: #{tpu_custom_call.1} parent=1 // pred_check
      _
    $region3: #{tpu_custom_call.1} parent=1 // pred_check_branch
      %13 = sbr.rel (0) target = $region5
    $region4: #{tpu_custom_call.1} parent=1 // pred_region
      %s15 = ssub.s32 512, 512
      %16 = vsyncadd [#allocation3], %s15
      %s17 = sshll.u32 [#allocation2], 4
      %s18 = int_to_ptr.vmem [resolvable:$true] %s17
      %23 = dma.hbm_to_vmem [thread:$0]  %s0, 512, %s18, [#allocation3], 128, 128, 8
    $region5: #{tpu_custom_call.1} parent=1 // pred_fallthru
      _
    // Predicated region
    $region6: #{tpu_custom_call.1} parent=1 // pred_check
      _
    $region7: #{tpu_custom_call.1} parent=1 // pred_check_branch
      %25 = sbr.rel (0) target = $region9
    $region8: #{tpu_custom_call.1} parent=1 // pred_region
      _
    $region9: #{tpu_custom_call.1} parent=1 // pred_fallthru
      _
    // Predicated region
    $region10: #{tpu_custom_call.1} parent=1 // pred_check
      _
    $region11: #{tpu_custom_call.1} parent=1 // pred_check_branch
      %27 = sbr.rel (0) target = $region13
    $region12: #{tpu_custom_call.1} parent=1 // pred_region
      _
    $region13: #{tpu_custom_call.1} parent=1 // pred_fallthru
      _
    // Predicated region
    $region14: #{tpu_custom_call.1} parent=1 // pred_check
      _
    $region15: #{tpu_custom_call.1} parent=1 // pred_check_branch
      %29 = sbr.rel (0) target = $region17
    $region16: #{tpu_custom_call.1} parent=1 // pred_region
      _
    $region17: #{tpu_custom_call.1} parent=1 // pred_fallthru
      _
    // Predicated region
    $region18: #{tpu_custom_call.1} parent=1 // pred_check
      _
    $region19: #{tpu_custom_call.1} parent=1 // pred_check_branch
      %31 = sbr.rel (0) target = $region21
    $region20: #{tpu_custom_call.1} parent=1 // pred_region
      _
    $region21: #{tpu_custom_call.1} parent=1 // pred_fallthru
      _
    // Predicated region
    $region22: #{tpu_custom_call.1} parent=1 // pred_check
      _
    $region23: #{tpu_custom_call.1} parent=1 // pred_check_branch
      %33 = sbr.rel (0) target = $region25
    $region24: #{tpu_custom_call.1} parent=1 // pred_region
      _
    $region25: #{tpu_custom_call.1} parent=1 // pred_fallthru
      _
    // Predicated region
    $region26: #{tpu_custom_call.1} parent=1 // pred_check
      _
    $region27: #{tpu_custom_call.1} parent=1 // pred_check_branch
      %35 = sbr.rel (0) target = $region29
    $region28: #{tpu_custom_call.1} parent=1 // pred_region
      %36 = dma.done [#allocation3], 512
    $region29: #{tpu_custom_call.1} parent=1 // pred_fallthru
      _
    %v37 = vld [vmem:[#allocation2] sm:$0xff]
    %v38 = vld [vmem:[#allocation2 + $0x8] sm:$0xff]
    %v39 = vld [vmem:[#allocation2 + $0x10] sm:$0xff]
    %v40 = vld [vmem:[#allocation2 + $0x18] sm:$0xff]
    %v41 = vld [vmem:[%s1] sm:$0xff]
    %v42 = vld [vmem:[%s1 + $0x8] sm:$0xff]
    %v43 = vld [vmem:[%s1 + $0x10] sm:$0xff]
    %v44 = vld [vmem:[%s1 + $0x18] sm:$0xff]
    %v45 = vld [vmem:[%s2] sm:$0xff]
    %v46 = vld [vmem:[%s3] sm:$0x1]
    %v48 = vlaneseq
    %v49 = vshrl.u32 %v48, 7
    %v50 = vsub.s32 0, %v49
    %v51 = vrot.slane %v46, %v50
    %vm53 = vcmask 64512
    %v55 = vsel %vm53, %v41, 0
    %v58 = vsel %vm53, %v42, 0
    %v61 = vsel %vm53, %v43, 0
    %v64 = vsel %vm53, %v44, 0
    %66 = vmatprep.subr.mxu0 0.0
    %67 = vmatpush1.msra.mxu0 %v45
    %68 = vmatprep.subr.mxu0 0.0
    %69 = vmatpush1.msra.mxu0 0.0
    %70 = vmatprep.subr.mxu0 0.0
    %71 = vmatpush1.msra.mxu0 0.0
    %72 = vmatprep.subr.mxu0 0.0
    %73 = vmatpush1.msra.mxu0 0.0
    %74 = vmatprep.subr.mxu0 0.0
    %75 = vmatpush1.msra.mxu0 0.0
    %76 = vmatprep.subr.mxu0 0.0
    %77 = vmatpush1.msra.mxu0 0.0
    %78 = vmatprep.subr.mxu0 0.0
    %79 = vmatpush1.msra.mxu0 0.0
    %80 = vmatprep.subr.mxu0 0.0
    %81 = vmatpush1.msra.mxu0 0.0
    %82 = vmatprep.subr.mxu0 0.0
    %83 = vmatpush1.msra.mxu0 0.0
    %84 = vmatprep.subr.mxu0 0.0
    %85 = vmatpush1.msra.mxu0 0.0
    %86 = vmatprep.subr.mxu0 0.0
    %87 = vmatpush1.msra.mxu0 0.0
    %88 = vmatprep.subr.mxu0 0.0
    %89 = vmatpush1.msra.mxu0 0.0
    %90 = vmatprep.subr.mxu0 0.0
    %91 = vmatpush1.msra.mxu0 0.0
    %92 = vmatprep.subr.mxu0 0.0
    %93 = vmatpush1.msra.mxu0 0.0
    %94 = vmatprep.subr.mxu0 0.0
    %95 = vmatpush1.msra.mxu0 0.0
    %96 = vmatprep.subr.mxu0 0.0
    %97 = vmatpush1.msra.mxu0 0.0
    %98 = vmatprep.subr.mxu0 0.0
    %99 = vmatpush1.msra.mxu0 0.0
    %100 = vmatprep.subr.mxu0 0.0
    %101 = vmatpush1.msra.mxu0 0.0
    %102 = vmatprep.subr.mxu0 0.0
    %103 = vmatpush1.msra.mxu0 0.0
    %104 = vmatprep.subr.mxu0 0.0
    %105 = vmatpush1.msra.mxu0 0.0
    %106 = vmatprep.subr.mxu0 0.0
    %107 = vmatpush1.msra.mxu0 0.0
    %108 = vmatprep.subr.mxu0 0.0
    %109 = vmatpush1.msra.mxu0 0.0
    %110 = vmatprep.subr.mxu0 0.0
    %111 = vmatpush1.msra.mxu0 0.0
    %112 = vmatprep.subr.mxu0 0.0
    %113 = vmatpush1.msra.mxu0 0.0
    %114 = vmatprep.subr.mxu0 0.0
    %115 = vmatpush1.msra.mxu0 0.0
    %116 = vmatprep.subr.mxu0 0.0
    %117 = vmatpush1.msra.mxu0 0.0
    %118 = vmatprep.subr.mxu0 0.0
    %119 = vmatpush1.msra.mxu0 0.0
    %120 = vmatprep.subr.mxu0 0.0
    %121 = vmatpush1.msra.mxu0 0.0
    %122 = vmatprep.subr.mxu0 0.0
    %123 = vmatpush1.msra.mxu0 0.0
    %124 = vmatprep.subr.mxu0 0.0
    %125 = vmatpush1.msra.mxu0 0.0
    %126 = vmatprep.subr.mxu0 0.0
    %127 = vmatpush1.msra.mxu0 0.0
    %128 = vmatprep.subr.mxu0 0.0
    %129 = vmatpush1.msra.mxu0 0.0
    %130 = vmatprep.mubr.f32.mxu0 0.0
    %131 = vmatmul.mubr.f32.gmra.mrb[0].mxu0 %v55
    %v132 = vpop.f32.mrb[0].mxu0
    %v133 = vadd.f32 %v51, %v132
    %v134 = vpop.f32.mrb[0].mxu0
    %135 = vmatprep.mubr.f32.mxu0 0.0
    %136 = vmatmul.mubr.f32.gmra.mrb[0].mxu0 %v58
    %v137 = vpop.f32.mrb[0].mxu0
    %v138 = vadd.f32 %v51, %v137
    %v139 = vpop.f32.mrb[0].mxu0
    %140 = vmatprep.mubr.f32.mxu0 0.0
    %141 = vmatmul.mubr.f32.gmra.mrb[0].mxu0 %v61
    %v142 = vpop.f32.mrb[0].mxu0
    %v143 = vadd.f32 %v51, %v142
    %v144 = vpop.f32.mrb[0].mxu0
    %145 = vmatprep.mubr.f32.mxu0 0.0
    %146 = vmatmul.mubr.f32.gmra.mrb[0].mxu0 %v64
    %v147 = vpop.f32.mrb[0].mxu0
    %v148 = vadd.f32 %v51, %v147
    %v149 = vpop.f32.mrb[0].mxu0
    %150 = vdwg.mxu0
    %155 = vrot.lane.b32.xlu0 %v133, 96
    %v156 = vpop.permute.xlu0 %155
    %157 = vrot.lane.b32.xlu0 %v138, 96
    %v158 = vpop.permute.xlu0 %157
    %159 = vrot.lane.b32.xlu0 %v143, 96
    %v160 = vpop.permute.xlu0 %159
    %161 = vrot.lane.b32.xlu0 %v148, 96
    %v162 = vpop.permute.xlu0 %161
    %163 = vrot.lane.b32.xlu0 %v133, 64
    %v164 = vpop.permute.xlu0 %163
    %165 = vrot.lane.b32.xlu0 %v138, 64
    %v166 = vpop.permute.xlu0 %165
    %167 = vrot.lane.b32.xlu0 %v143, 64
    %v168 = vpop.permute.xlu0 %167
    %169 = vrot.lane.b32.xlu0 %v148, 64
    %v170 = vpop.permute.xlu0 %169
    %171 = vrot.lane.b32.xlu0 %v156, 96
    %v172 = vpop.permute.xlu0 %171
    %173 = vrot.lane.b32.xlu0 %v158, 96
    %v174 = vpop.permute.xlu0 %173
    %175 = vrot.lane.b32.xlu0 %v164, 96
    %v176 = vpop.permute.xlu0 %175
    %177 = vrot.lane.b32.xlu0 %v166, 96
    %v178 = vpop.permute.xlu0 %177
    %vm185 = vcmask 392192
    %v187 = vsel %vm185, %v37, 0
    %v190 = vsel %vm185, %v38, 0
    %192 = vmatprep.subr.mxu0 0.0
    %193 = vmatpush1.msra.mxu0 %v156
    %194 = vmatprep.subr.mxu0 0.0
    %195 = vmatpush1.msra.mxu0 %v158
    %196 = vmatprep.subr.mxu0 0.0
    %197 = vmatpush1.msra.mxu0 %v172
    %198 = vmatprep.subr.mxu0 0.0
    %199 = vmatpush1.msra.mxu0 %v174
    %200 = vmatprep.subr.mxu0 0.0
    %201 = vmatpush1.msra.mxu0 %v176
    %202 = vmatprep.subr.mxu0 0.0
    %203 = vmatpush1.msra.mxu0 %v178
    %204 = vmatprep.subr.mxu0 0.0
    %205 = vmatpush1.msra.mxu0 0.0
    %206 = vmatprep.subr.mxu0 0.0
    %207 = vmatpush1.msra.mxu0 0.0
    %208 = vmatprep.subr.mxu0 0.0
    %209 = vmatpush1.msra.mxu0 0.0
    %210 = vmatprep.subr.mxu0 0.0
    %211 = vmatpush1.msra.mxu0 0.0
    %212 = vmatprep.subr.mxu0 0.0
    %213 = vmatpush1.msra.mxu0 0.0
    %214 = vmatprep.subr.mxu0 0.0
    %215 = vmatpush1.msra.mxu0 0.0
    %216 = vmatprep.subr.mxu0 0.0
    %217 = vmatpush1.msra.mxu0 0.0
    %218 = vmatprep.subr.mxu0 0.0
    %219 = vmatpush1.msra.mxu0 0.0
    %220 = vmatprep.subr.mxu0 0.0
    %221 = vmatpush1.msra.mxu0 0.0
    %222 = vmatprep.subr.mxu0 0.0
    %223 = vmatpush1.msra.mxu0 0.0
    %224 = vmatprep.subr.mxu0 0.0
    %225 = vmatpush1.msra.mxu0 0.0
    %226 = vmatprep.subr.mxu0 0.0
    %227 = vmatpush1.msra.mxu0 0.0
    %228 = vmatprep.subr.mxu0 0.0
    %229 = vmatpush1.msra.mxu0 0.0
    %230 = vmatprep.subr.mxu0 0.0
    %231 = vmatpush1.msra.mxu0 0.0
    %232 = vmatprep.subr.mxu0 0.0
    %233 = vmatpush1.msra.mxu0 0.0
    %234 = vmatprep.subr.mxu0 0.0
    %235 = vmatpush1.msra.mxu0 0.0
    %236 = vmatprep.subr.mxu0 0.0
    %237 = vmatpush1.msra.mxu0 0.0
    %238 = vmatprep.subr.mxu0 0.0
    %239 = vmatpush1.msra.mxu0 0.0
    %240 = vmatprep.subr.mxu0 0.0
    %241 = vmatpush1.msra.mxu0 0.0
    %242 = vmatprep.subr.mxu0 0.0
    %243 = vmatpush1.msra.mxu0 0.0
    %244 = vmatprep.subr.mxu0 0.0
    %245 = vmatpush1.msra.mxu0 0.0
    %246 = vmatprep.subr.mxu0 0.0
    %247 = vmatpush1.msra.mxu0 0.0
    %248 = vmatprep.subr.mxu0 0.0
    %249 = vmatpush1.msra.mxu0 0.0
    %250 = vmatprep.subr.mxu0 0.0
    %251 = vmatpush1.msra.mxu0 0.0
    %252 = vmatprep.subr.mxu0 0.0
    %253 = vmatpush1.msra.mxu0 0.0
    %254 = vmatprep.subr.mxu0 0.0
    %255 = vmatpush1.msra.mxu0 0.0
    %256 = vmatprep.mubr.f32.mxu0 0.0
    %257 = vmatmul.mubr.f32.gmra.mrb[0].mxu0 %v187
    %v258 = vpop.f32.mrb[0].mxu0
    %v259 = vadd.f32 0.0, %v258
    %v260 = vpop.f32.mrb[0].mxu0
    %261 = vmatprep.mubr.f32.mxu0 0.0
    %262 = vmatmul.mubr.f32.gmra.mrb[0].mxu0 %v190
    %v263 = vpop.f32.mrb[0].mxu0
    %v264 = vadd.f32 0.0, %v263
    %v265 = vpop.f32.mrb[0].mxu0
    %266 = vdwg.mxu0
    %267 = vrot.lane.b32.xlu0 %v160, 96
    %v268 = vpop.permute.xlu0 %267
    %269 = vrot.lane.b32.xlu0 %v162, 96
    %v270 = vpop.permute.xlu0 %269
    %271 = vrot.lane.b32.xlu0 %v168, 96
    %v272 = vpop.permute.xlu0 %271
    %273 = vrot.lane.b32.xlu0 %v170, 96
    %v274 = vpop.permute.xlu0 %273
    %v282 = vsel %vm185, %v39, 0
    %v285 = vsel %vm185, %v40, 0
    %287 = vmatprep.subr.mxu0 0.0
    %288 = vmatpush1.msra.mxu0 %v160
    %289 = vmatprep.subr.mxu0 0.0
    %290 = vmatpush1.msra.mxu0 %v162
    %291 = vmatprep.subr.mxu0 0.0
    %292 = vmatpush1.msra.mxu0 %v268
    %293 = vmatprep.subr.mxu0 0.0
    %294 = vmatpush1.msra.mxu0 %v270
    %295 = vmatprep.subr.mxu0 0.0
    %296 = vmatpush1.msra.mxu0 %v272
    %297 = vmatprep.subr.mxu0 0.0
    %298 = vmatpush1.msra.mxu0 %v274
    %299 = vmatprep.subr.mxu0 0.0
    %300 = vmatpush1.msra.mxu0 0.0
    %301 = vmatprep.subr.mxu0 0.0
    %302 = vmatpush1.msra.mxu0 0.0
    %303 = vmatprep.subr.mxu0 0.0
    %304 = vmatpush1.msra.mxu0 0.0
    %305 = vmatprep.subr.mxu0 0.0
    %306 = vmatpush1.msra.mxu0 0.0
    %307 = vmatprep.subr.mxu0 0.0
    %308 = vmatpush1.msra.mxu0 0.0
    %309 = vmatprep.subr.mxu0 0.0
    %310 = vmatpush1.msra.mxu0 0.0
    %311 = vmatprep.subr.mxu0 0.0
    %312 = vmatpush1.msra.mxu0 0.0
    %313 = vmatprep.subr.mxu0 0.0
    %314 = vmatpush1.msra.mxu0 0.0
    %315 = vmatprep.subr.mxu0 0.0
    %316 = vmatpush1.msra.mxu0 0.0
    %317 = vmatprep.subr.mxu0 0.0
    %318 = vmatpush1.msra.mxu0 0.0
    %319 = vmatprep.subr.mxu0 0.0
    %320 = vmatpush1.msra.mxu0 0.0
    %321 = vmatprep.subr.mxu0 0.0
    %322 = vmatpush1.msra.mxu0 0.0
    %323 = vmatprep.subr.mxu0 0.0
    %324 = vmatpush1.msra.mxu0 0.0
    %325 = vmatprep.subr.mxu0 0.0
    %326 = vmatpush1.msra.mxu0 0.0
    %327 = vmatprep.subr.mxu0 0.0
    %328 = vmatpush1.msra.mxu0 0.0
    %329 = vmatprep.subr.mxu0 0.0
    %330 = vmatpush1.msra.mxu0 0.0
    %331 = vmatprep.subr.mxu0 0.0
    %332 = vmatpush1.msra.mxu0 0.0
    %333 = vmatprep.subr.mxu0 0.0
    %334 = vmatpush1.msra.mxu0 0.0
    %335 = vmatprep.subr.mxu0 0.0
    %336 = vmatpush1.msra.mxu0 0.0
    %337 = vmatprep.subr.mxu0 0.0
    %338 = vmatpush1.msra.mxu0 0.0
    %339 = vmatprep.subr.mxu0 0.0
    %340 = vmatpush1.msra.mxu0 0.0
    %341 = vmatprep.subr.mxu0 0.0
    %342 = vmatpush1.msra.mxu0 0.0
    %343 = vmatprep.subr.mxu0 0.0
    %344 = vmatpush1.msra.mxu0 0.0
    %345 = vmatprep.subr.mxu0 0.0
    %346 = vmatpush1.msra.mxu0 0.0
    %347 = vmatprep.subr.mxu0 0.0
    %348 = vmatpush1.msra.mxu0 0.0
    %349 = vmatprep.subr.mxu0 0.0
    %350 = vmatpush1.msra.mxu0 0.0
    %351 = vmatprep.mubr.f32.mxu0 0.0
    %352 = vmatmul.mubr.f32.gmra.mrb[0].mxu0 %v282
    %v353 = vpop.f32.mrb[0].mxu0
    %v354 = vadd.f32 0.0, %v353
    %v355 = vpop.f32.mrb[0].mxu0
    %356 = vmatprep.mubr.f32.mxu0 0.0
    %357 = vmatmul.mubr.f32.gmra.mrb[0].mxu0 %v285
    %v358 = vpop.f32.mrb[0].mxu0
    %v359 = vadd.f32 0.0, %v358
    %v360 = vpop.f32.mrb[0].mxu0
    %361 = vdwg.mxu0
    %v362 = vadd.f32 %v259, %v133
    %v363 = vadd.f32 %v264, %v138
    %v364 = vadd.f32 %v354, %v143
    %v365 = vadd.f32 %v359, %v148
    %v366 = vtanh.pop %v362
    %v367 = vtanh.pop %v363
    %v368 = vtanh.pop %v364
    %v369 = vtanh.pop %v365
    %v370 = vld [vmem:[%s4] sm:$0xff]
    %v371 = vld [vmem:[%s4 + $0x8] sm:$0xff]
    %v372 = vld [vmem:[%s4 + $0x10] sm:$0xff]
    %v373 = vld [vmem:[%s4 + $0x18] sm:$0xff]
    %v374 = vld [vmem:[%s4 + $0x20] sm:$0xff]
    %v375 = vld [vmem:[%s5] sm:$0x1]
    %376 = vrot.lane.b32.xlu0 %v41, 32
    %v377 = vpop.permute.xlu0 %376
    %378 = vrot.lane.b32.xlu0 %v42, 32
    %v379 = vpop.permute.xlu0 %378
    %380 = vrot.lane.b32.xlu0 %v43, 32
    %v381 = vpop.permute.xlu0 %380
    %382 = vrot.lane.b32.xlu0 %v44, 32
    %v383 = vpop.permute.xlu0 %382
    %vm388 = vcmask 261120
    %v389 = vsel %vm388, %v366, %v377
    %v390 = vsel %vm388, %v367, %v379
    %v391 = vsel %vm388, %v368, %v381
    %v392 = vsel %vm388, %v369, %v383
    %v394 = vlaneseq
    %v395 = vshrl.u32 %v394, 7
    %v396 = vsub.s32 0, %v395
    %v397 = vrot.slane %v375, %v396
    %vm399 = vcmask 326656
    %v401 = vsel %vm399, %v389, 0
    %v404 = vsel %vm399, %v390, 0
    %v407 = vsel %vm399, %v391, 0
    %v410 = vsel %vm399, %v392, 0
    %412 = vmatprep.subr.mxu0 0.0
    %413 = vmatpush1.msra.mxu0 %v370
    %414 = vmatprep.subr.mxu0 0.0
    %415 = vmatpush1.msra.mxu0 %v371
    %416 = vmatprep.subr.mxu0 0.0
    %417 = vmatpush1.msra.mxu0 %v372
    %418 = vmatprep.subr.mxu0 0.0
    %419 = vmatpush1.msra.mxu0 %v373
    %420 = vmatprep.subr.mxu0 0.0
    %421 = vmatpush1.msra.mxu0 %v374
    %422 = vmatprep.subr.mxu0 0.0
    %423 = vmatpush1.msra.mxu0 0.0
    %424 = vmatprep.subr.mxu0 0.0
    %425 = vmatpush1.msra.mxu0 0.0
    %426 = vmatprep.subr.mxu0 0.0
    %427 = vmatpush1.msra.mxu0 0.0
    %428 = vmatprep.subr.mxu0 0.0
    %429 = vmatpush1.msra.mxu0 0.0
    %430 = vmatprep.subr.mxu0 0.0
    %431 = vmatpush1.msra.mxu0 0.0
    %432 = vmatprep.subr.mxu0 0.0
    %433 = vmatpush1.msra.mxu0 0.0
    %434 = vmatprep.subr.mxu0 0.0
    %435 = vmatpush1.msra.mxu0 0.0
    %436 = vmatprep.subr.mxu0 0.0
    %437 = vmatpush1.msra.mxu0 0.0
    %438 = vmatprep.subr.mxu0 0.0
    %439 = vmatpush1.msra.mxu0 0.0
    %440 = vmatprep.subr.mxu0 0.0
    %441 = vmatpush1.msra.mxu0 0.0
    %442 = vmatprep.subr.mxu0 0.0
    %443 = vmatpush1.msra.mxu0 0.0
    %444 = vmatprep.subr.mxu0 0.0
    %445 = vmatpush1.msra.mxu0 0.0
    %446 = vmatprep.subr.mxu0 0.0
    %447 = vmatpush1.msra.mxu0 0.0
    %448 = vmatprep.subr.mxu0 0.0
    %449 = vmatpush1.msra.mxu0 0.0
    %450 = vmatprep.subr.mxu0 0.0
    %451 = vmatpush1.msra.mxu0 0.0
    %452 = vmatprep.subr.mxu0 0.0
    %453 = vmatpush1.msra.mxu0 0.0
    %454 = vmatprep.subr.mxu0 0.0
    %455 = vmatpush1.msra.mxu0 0.0
    %456 = vmatprep.subr.mxu0 0.0
    %457 = vmatpush1.msra.mxu0 0.0
    %458 = vmatprep.subr.mxu0 0.0
    %459 = vmatpush1.msra.mxu0 0.0
    %460 = vmatprep.subr.mxu0 0.0
    %461 = vmatpush1.msra.mxu0 0.0
    %462 = vmatprep.subr.mxu0 0.0
    %463 = vmatpush1.msra.mxu0 0.0
    %464 = vmatprep.subr.mxu0 0.0
    %465 = vmatpush1.msra.mxu0 0.0
    %466 = vmatprep.subr.mxu0 0.0
    %467 = vmatpush1.msra.mxu0 0.0
    %468 = vmatprep.subr.mxu0 0.0
    %469 = vmatpush1.msra.mxu0 0.0
    %470 = vmatprep.subr.mxu0 0.0
    %471 = vmatpush1.msra.mxu0 0.0
    %472 = vmatprep.subr.mxu0 0.0
    %473 = vmatpush1.msra.mxu0 0.0
    %474 = vmatprep.subr.mxu0 0.0
    %475 = vmatpush1.msra.mxu0 0.0
    %476 = vmatprep.mubr.f32.mxu0 0.0
    %477 = vmatmul.mubr.f32.gmra.mrb[0].mxu0 %v401
    %v478 = vpop.f32.mrb[0].mxu0
    %v479 = vadd.f32 %v397, %v478
    %v480 = vpop.f32.mrb[0].mxu0
    %481 = vmatprep.mubr.f32.mxu0 0.0
    %482 = vmatmul.mubr.f32.gmra.mrb[0].mxu0 %v404
    %v483 = vpop.f32.mrb[0].mxu0
    %v484 = vadd.f32 %v397, %v483
    %v485 = vpop.f32.mrb[0].mxu0
    %486 = vmatprep.mubr.f32.mxu0 0.0
    %487 = vmatmul.mubr.f32.gmra.mrb[0].mxu0 %v407
    %v488 = vpop.f32.mrb[0].mxu0
    %v489 = vadd.f32 %v397, %v488
    %v490 = vpop.f32.mrb[0].mxu0
    %491 = vmatprep.mubr.f32.mxu0 0.0
    %492 = vmatmul.mubr.f32.gmra.mrb[0].mxu0 %v410
    %v493 = vpop.f32.mrb[0].mxu0
    %v494 = vadd.f32 %v397, %v493
    %v495 = vpop.f32.mrb[0].mxu0
    %496 = vdwg.mxu0
    %501 = vrot.lane.b32.xlu0 %v479, 112
    %v502 = vpop.permute.xlu0 %501
    %503 = vrot.lane.b32.xlu0 %v484, 112
    %v504 = vpop.permute.xlu0 %503
    %505 = vrot.lane.b32.xlu0 %v489, 112
    %v506 = vpop.permute.xlu0 %505
    %507 = vrot.lane.b32.xlu0 %v494, 112
    %v508 = vpop.permute.xlu0 %507
    %509 = vrot.lane.b32.xlu0 %v479, 96
    %v510 = vpop.permute.xlu0 %509
    %511 = vrot.lane.b32.xlu0 %v484, 96
    %v512 = vpop.permute.xlu0 %511
    %513 = vrot.lane.b32.xlu0 %v489, 96
    %v514 = vpop.permute.xlu0 %513
    %515 = vrot.lane.b32.xlu0 %v494, 96
    %v516 = vpop.permute.xlu0 %515
    %517 = vrot.lane.b32.xlu0 %v502, 112
    %v518 = vpop.permute.xlu0 %517
    %519 = vrot.lane.b32.xlu0 %v504, 112
    %v520 = vpop.permute.xlu0 %519
    %521 = vrot.lane.b32.xlu0 %v510, 112
    %v522 = vpop.permute.xlu0 %521
    %523 = vrot.lane.b32.xlu0 %v512, 112
    %v524 = vpop.permute.xlu0 %523
    %531 = vmatprep.subr.mxu0 0.0
    %532 = vmatpush1.msra.mxu0 %v502
    %533 = vmatprep.subr.mxu0 0.0
    %534 = vmatpush1.msra.mxu0 %v504
    %535 = vmatprep.subr.mxu0 0.0
    %536 = vmatpush1.msra.mxu0 %v518
    %537 = vmatprep.subr.mxu0 0.0
    %538 = vmatpush1.msra.mxu0 %v520
    %539 = vmatprep.subr.mxu0 0.0
    %540 = vmatpush1.msra.mxu0 %v522
    %541 = vmatprep.subr.mxu0 0.0
    %542 = vmatpush1.msra.mxu0 %v524
    %543 = vmatprep.subr.mxu0 0.0
    %544 = vmatpush1.msra.mxu0 0.0
    %545 = vmatprep.subr.mxu0 0.0
    %546 = vmatpush1.msra.mxu0 0.0
    %547 = vmatprep.subr.mxu0 0.0
    %548 = vmatpush1.msra.mxu0 0.0
    %549 = vmatprep.subr.mxu0 0.0
    %550 = vmatpush1.msra.mxu0 0.0
    %551 = vmatprep.subr.mxu0 0.0
    %552 = vmatpush1.msra.mxu0 0.0
    %553 = vmatprep.subr.mxu0 0.0
    %554 = vmatpush1.msra.mxu0 0.0
    %555 = vmatprep.subr.mxu0 0.0
    %556 = vmatpush1.msra.mxu0 0.0
    %557 = vmatprep.subr.mxu0 0.0
    %558 = vmatpush1.msra.mxu0 0.0
    %559 = vmatprep.subr.mxu0 0.0
    %560 = vmatpush1.msra.mxu0 0.0
    %561 = vmatprep.subr.mxu0 0.0
    %562 = vmatpush1.msra.mxu0 0.0
    %563 = vmatprep.subr.mxu0 0.0
    %564 = vmatpush1.msra.mxu0 0.0
    %565 = vmatprep.subr.mxu0 0.0
    %566 = vmatpush1.msra.mxu0 0.0
    %567 = vmatprep.subr.mxu0 0.0
    %568 = vmatpush1.msra.mxu0 0.0
    %569 = vmatprep.subr.mxu0 0.0
    %570 = vmatpush1.msra.mxu0 0.0
    %571 = vmatprep.subr.mxu0 0.0
    %572 = vmatpush1.msra.mxu0 0.0
    %573 = vmatprep.subr.mxu0 0.0
    %574 = vmatpush1.msra.mxu0 0.0
    %575 = vmatprep.subr.mxu0 0.0
    %576 = vmatpush1.msra.mxu0 0.0
    %577 = vmatprep.subr.mxu0 0.0
    %578 = vmatpush1.msra.mxu0 0.0
    %579 = vmatprep.subr.mxu0 0.0
    %580 = vmatpush1.msra.mxu0 0.0
    %581 = vmatprep.subr.mxu0 0.0
    %582 = vmatpush1.msra.mxu0 0.0
    %583 = vmatprep.subr.mxu0 0.0
    %584 = vmatpush1.msra.mxu0 0.0
    %585 = vmatprep.subr.mxu0 0.0
    %586 = vmatpush1.msra.mxu0 0.0
    %587 = vmatprep.subr.mxu0 0.0
    %588 = vmatpush1.msra.mxu0 0.0
    %589 = vmatprep.subr.mxu0 0.0
    %590 = vmatpush1.msra.mxu0 0.0
    %591 = vmatprep.subr.mxu0 0.0
    %592 = vmatpush1.msra.mxu0 0.0
    %593 = vmatprep.subr.mxu0 0.0
    %594 = vmatpush1.msra.mxu0 0.0
    %595 = vmatprep.mubr.f32.mxu0 0.0
    %596 = vmatmul.mubr.f32.gmra.mrb[0].mxu0 %v187
    %v597 = vpop.f32.mrb[0].mxu0
    %v598 = vadd.f32 0.0, %v597
    %v599 = vpop.f32.mrb[0].mxu0
    %600 = vmatprep.mubr.f32.mxu0 0.0
    %601 = vmatmul.mubr.f32.gmra.mrb[0].mxu0 %v190
    %v602 = vpop.f32.mrb[0].mxu0
    %v603 = vadd.f32 0.0, %v602
    %v604 = vpop.f32.mrb[0].mxu0
    %605 = vdwg.mxu0
    %606 = vrot.lane.b32.xlu0 %v506, 112
    %v607 = vpop.permute.xlu0 %606
    %608 = vrot.lane.b32.xlu0 %v508, 112
    %v609 = vpop.permute.xlu0 %608
    %610 = vrot.lane.b32.xlu0 %v514, 112
    %v611 = vpop.permute.xlu0 %610
    %612 = vrot.lane.b32.xlu0 %v516, 112
    %v613 = vpop.permute.xlu0 %612
    %620 = vmatprep.subr.mxu0 0.0
    %621 = vmatpush1.msra.mxu0 %v506
    %622 = vmatprep.subr.mxu0 0.0
    %623 = vmatpush1.msra.mxu0 %v508
    %624 = vmatprep.subr.mxu0 0.0
    %625 = vmatpush1.msra.mxu0 %v607
    %626 = vmatprep.subr.mxu0 0.0
    %627 = vmatpush1.msra.mxu0 %v609
    %628 = vmatprep.subr.mxu0 0.0
    %629 = vmatpush1.msra.mxu0 %v611
    %630 = vmatprep.subr.mxu0 0.0
    %631 = vmatpush1.msra.mxu0 %v613
    %632 = vmatprep.subr.mxu0 0.0
    %633 = vmatpush1.msra.mxu0 0.0
    %634 = vmatprep.subr.mxu0 0.0
    %635 = vmatpush1.msra.mxu0 0.0
    %636 = vmatprep.subr.mxu0 0.0
    %637 = vmatpush1.msra.mxu0 0.0
    %638 = vmatprep.subr.mxu0 0.0
    %639 = vmatpush1.msra.mxu0 0.0
    %640 = vmatprep.subr.mxu0 0.0
    %641 = vmatpush1.msra.mxu0 0.0
    %642 = vmatprep.subr.mxu0 0.0
    %643 = vmatpush1.msra.mxu0 0.0
    %644 = vmatprep.subr.mxu0 0.0
    %645 = vmatpush1.msra.mxu0 0.0
    %646 = vmatprep.subr.mxu0 0.0
    %647 = vmatpush1.msra.mxu0 0.0
    %648 = vmatprep.subr.mxu0 0.0
    %649 = vmatpush1.msra.mxu0 0.0
    %650 = vmatprep.subr.mxu0 0.0
    %651 = vmatpush1.msra.mxu0 0.0
    %652 = vmatprep.subr.mxu0 0.0
    %653 = vmatpush1.msra.mxu0 0.0
    %654 = vmatprep.subr.mxu0 0.0
    %655 = vmatpush1.msra.mxu0 0.0
    %656 = vmatprep.subr.mxu0 0.0
    %657 = vmatpush1.msra.mxu0 0.0
    %658 = vmatprep.subr.mxu0 0.0
    %659 = vmatpush1.msra.mxu0 0.0
    %660 = vmatprep.subr.mxu0 0.0
    %661 = vmatpush1.msra.mxu0 0.0
    %662 = vmatprep.subr.mxu0 0.0
    %663 = vmatpush1.msra.mxu0 0.0
    %664 = vmatprep.subr.mxu0 0.0
    %665 = vmatpush1.msra.mxu0 0.0
    %666 = vmatprep.subr.mxu0 0.0
    %667 = vmatpush1.msra.mxu0 0.0
    %668 = vmatprep.subr.mxu0 0.0
    %669 = vmatpush1.msra.mxu0 0.0
    %670 = vmatprep.subr.mxu0 0.0
    %671 = vmatpush1.msra.mxu0 0.0
    %672 = vmatprep.subr.mxu0 0.0
    %673 = vmatpush1.msra.mxu0 0.0
    %674 = vmatprep.subr.mxu0 0.0
    %675 = vmatpush1.msra.mxu0 0.0
    %676 = vmatprep.subr.mxu0 0.0
    %677 = vmatpush1.msra.mxu0 0.0
    %678 = vmatprep.subr.mxu0 0.0
    %679 = vmatpush1.msra.mxu0 0.0
    %680 = vmatprep.subr.mxu0 0.0
    %681 = vmatpush1.msra.mxu0 0.0
    %682 = vmatprep.subr.mxu0 0.0
    %683 = vmatpush1.msra.mxu0 0.0
    %684 = vmatprep.mubr.f32.mxu0 0.0
    %685 = vmatmul.mubr.f32.gmra.mrb[0].mxu0 %v282
    %v686 = vpop.f32.mrb[0].mxu0
    %v687 = vadd.f32 0.0, %v686
    %v688 = vpop.f32.mrb[0].mxu0
    %689 = vmatprep.mubr.f32.mxu0 0.0
    %690 = vmatmul.mubr.f32.gmra.mrb[0].mxu0 %v285
    %v691 = vpop.f32.mrb[0].mxu0
    %v692 = vadd.f32 0.0, %v691
    %v693 = vpop.f32.mrb[0].mxu0
    %694 = vdwg.mxu0
    %v695 = vadd.f32 %v598, %v479
    %v696 = vadd.f32 %v603, %v484
    %v697 = vadd.f32 %v687, %v489
    %v698 = vadd.f32 %v692, %v494
    %v699 = vtanh.pop %v695
    %v700 = vtanh.pop %v696
    %v701 = vtanh.pop %v697
    %v702 = vtanh.pop %v698
    %vm703 = vcmask 130048
    %704 = vst.msk [vmem:[%s6] sm:$0xff] %vm703, %v699
    %705 = vst.msk [vmem:[%s6 + $0x8] sm:$0xff] %vm703, %v700
    %706 = vst.msk [vmem:[%s6 + $0x10] sm:$0xff] %vm703, %v701
    %707 = vst.msk [vmem:[%s6 + $0x18] sm:$0xff] %vm703, %v702
    // Predicated region
    $region30: #{tpu_custom_call.1} parent=1 // pred_check
      _
    $region31: #{tpu_custom_call.1} parent=1 // pred_check_branch
      %709 = sbr.rel (0) target = $region33
    $region32: #{tpu_custom_call.1} parent=1 // pred_region
      _
    $region33: #{tpu_custom_call.1} parent=1 // pred_fallthru
      _
    // Predicated region
    $region34: #{tpu_custom_call.1} parent=1 // pred_check
      _
    $region35: #{tpu_custom_call.1} parent=1 // pred_check_branch
      %711 = sbr.rel (0) target = $region37
    $region36: #{tpu_custom_call.1} parent=1 // pred_region
      _
    $region37: #{tpu_custom_call.1} parent=1 // pred_fallthru
      _
    %712 = vsyncpa [#allocation3], 1

</llo_original>
